<compile_context>
chip_gen: v5e
topology: v5e:2x2
jax: 0.10.0
libtpu: 0.0.40
codegen_flags: <defaults>
</compile_context>

<pallas_src>
import math
from functools import partial

import jax
import jax.numpy as jnp
from jax.experimental import pallas as pl
from jax.experimental.pallas import tpu as pltpu


def _dot_sim_kernel(x_ref, y_ref, o_ref, *, temperature):
    # x_ref, y_ref: (tm, H) tiles; o_ref: (tm, 1)
    prod = x_ref[...] * y_ref[...]                                   # native dtype multiply
    s = jnp.sum(prod, axis=-1, keepdims=True, dtype=jnp.float32)     # f32 accumulate
    o_ref[...] = (s / temperature).astype(o_ref.dtype)


def dot_product_similarity(x: jax.Array, y: jax.Array,
                           temperature: float = 1.0,
                           tm: int | None = None) -> jax.Array:
    assert x.shape == y.shape, "x and y must have the same shape"
    *lead, H = x.shape
    M = math.prod(lead) if lead else 1

    out_dtype = jnp.result_type(x.dtype, y.dtype)
    if M == 0:
        return jnp.zeros(tuple(lead), dtype=out_dtype)

    x2 = x.reshape(M, H)
    y2 = y.reshape(M, H)

    isx = jnp.dtype(x.dtype).itemsize
    isy = jnp.dtype(y.dtype).itemsize
    itemsize = max(isx, isy)

    if tm is None:
        # ~4 MiB per input block => 2 inputs x 2 pipeline buffers ~= 16 MiB VMEM.
        per_buffer_bytes = 4 * 1024 * 1024
        tm = per_buffer_bytes // (H * itemsize)
        tm = int(max(8, min(8192, tm)))
    tm = max(8, int(tm))

    if M <= tm:
        tm = M                      # single block == full array: always a legal block
    else:
        tm -= tm % 8                # row tile must be a multiple of 8 sublanes

    n_blocks = pl.cdiv(M, tm)       # no input padding; ragged last block is masked

    grid_spec = pltpu.PrefetchScalarGridSpec(
        num_scalar_prefetch=0,
        grid=(n_blocks,),
        in_specs=[
            pl.BlockSpec((tm, H), lambda i: (i, 0)),
            pl.BlockSpec((tm, H), lambda i: (i, 0)),
        ],
        out_specs=pl.BlockSpec((tm, 1), lambda i: (i, 0)),
    )

    out = pl.pallas_call(
        partial(_dot_sim_kernel, temperature=float(temperature)),
        out_shape=jax.ShapeDtypeStruct((M, 1), out_dtype),
        grid_spec=grid_spec,
        compiler_params=pltpu.CompilerParams(
            dimension_semantics=("parallel",),          # v7x: shard rows over both TCs
            vmem_limit_bytes=32 * 1024 * 1024,          # > v5e's 16 MiB scoped default
        ),
        cost_estimate=pl.CostEstimate(
            flops=2 * M * H,
            transcendentals=0,
            bytes_accessed=M * H * (isx + isy) + M * jnp.dtype(out_dtype).itemsize,
        ),
    )(x2, y2)

    return out.reshape(tuple(lead))


if __name__ == "__main__":
    key = jax.random.PRNGKey(0)
    kx, ky = jax.random.split(key)

    # Primary small-shape check: batch=2, seq=8, hidden=32 (single-block path).
    x = jax.random.normal(kx, (2, 8, 32), dtype=jnp.float32)
    y = jax.random.normal(ky, (2, 8, 32), dtype=jnp.float32)
    temperature = 2.0
    out = jax.block_until_ready(dot_product_similarity(x, y, temperature=temperature))
    ref = jnp.sum(x * y, axis=-1) / temperature
    assert out.shape == ref.shape == (2, 8)
    assert jnp.allclose(out, ref, atol=1e-5, rtol=1e-5)

    # Multi-block path with a ragged last tile (M=400, tm=64 -> 7 blocks).
    k2x, k2y = jax.random.split(jax.random.PRNGKey(1))
    x2 = jax.random.normal(k2x, (4, 100, 128), dtype=jnp.float32)
    y2 = jax.random.normal(k2y, (4, 100, 128), dtype=jnp.float32)
    out2 = jax.block_until_ready(dot_product_similarity(x2, y2, temperature=1.5, tm=64))
    ref2 = jnp.sum(x2 * y2, axis=-1) / 1.5
    assert out2.shape == ref2.shape == (4, 100)
    assert jnp.allclose(out2, ref2, atol=1e-4, rtol=1e-5)

    # bf16 path: multiply in bf16, accumulate in f32.
    xb = x.astype(jnp.bfloat16)
    yb = y.astype(jnp.bfloat16)
    out3 = jax.block_until_ready(dot_product_similarity(xb, yb, temperature=temperature))
    ref3 = jnp.sum(xb.astype(jnp.float32) * yb.astype(jnp.float32), axis=-1) / temperature
    assert out3.dtype == jnp.bfloat16 and out3.shape == (2, 8)
    assert jnp.allclose(out3.astype(jnp.float32), ref3, atol=1e-1, rtol=5e-2)

    print("KERNEL_OK")
</pallas_src>

<mosaic_0001>
module attributes {stable_mosaic.version = 11 : i64} {
  func.func @_dot_sim_kernel(%arg0: i32, %arg1: memref<16x32xf32, #tpu.memory_space<vmem>>, %arg2: memref<16x32xf32, #tpu.memory_space<vmem>>, %arg3: memref<16x1xf32, #tpu.memory_space<vmem>>) attributes {dimension_semantics = [#tpu.dimension_semantics<parallel>], iteration_bounds = array<i64: 1>, scalar_prefetch = 0 : i64, scratch_operands = 0 : i64, tpu.core_type = #tpu.core_type<tc>, window_params = [{transform_indices = @transform_0, window_bounds = array<i64: 16, 32>}, {transform_indices = @transform_1, window_bounds = array<i64: 16, 32>}, {transform_indices = @transform_2, window_bounds = array<i64: 16, 1>}]} {
    %c0 = arith.constant 0 : index
    %c0_0 = arith.constant 0 : index
    %0 = vector.load %arg1[%c0, %c0_0] : memref<16x32xf32, #tpu.memory_space<vmem>>, vector<16x32xf32>
    %c0_1 = arith.constant 0 : index
    %c0_2 = arith.constant 0 : index
    %1 = vector.load %arg2[%c0_1, %c0_2] : memref<16x32xf32, #tpu.memory_space<vmem>>, vector<16x32xf32>
    %2 = arith.mulf %0, %1 : vector<16x32xf32>
    %cst = arith.constant dense<0.000000e+00> : vector<16xf32>
    %3 = vector.multi_reduction <add>, %2, %cst [1] : vector<16x32xf32> to vector<16xf32>
    %4 = vector.shape_cast %3 : vector<16xf32> to vector<16x1xf32>
    %cst_3 = arith.constant 2.000000e+00 : f32
    %5 = vector.broadcast %cst_3 : f32 to vector<16x1xf32>
    %6 = arith.divf %4, %5 : vector<16x1xf32>
    %c0_4 = arith.constant 0 : index
    %c0_5 = arith.constant 0 : index
    %7 = vector.load %arg3[%c0_4, %c0_5] : memref<16x1xf32, #tpu.memory_space<vmem>>, vector<16x1xf32>
    tpu.vector_store %arg3[%c0_4, %c0_5], %6 {strides = array<i32>} : memref<16x1xf32, #tpu.memory_space<vmem>>, vector<16x1xf32>,
    return
  }
  func.func @transform_0(%arg0: i32) -> (i32, i32) {
    %c0_i32 = arith.constant 0 : i32
    %c0_i32_0 = arith.constant 0 : i32
    return %arg0, %c0_i32 : i32, i32
  }
  func.func @transform_1(%arg0: i32) -> (i32, i32) {
    %c0_i32 = arith.constant 0 : i32
    %c0_i32_0 = arith.constant 0 : i32
    return %arg0, %c0_i32 : i32, i32
  }
  func.func @transform_2(%arg0: i32) -> (i32, i32) {
    %c0_i32 = arith.constant 0 : i32
    %c0_i32_0 = arith.constant 0 : i32
    return %arg0, %c0_i32 : i32, i32
  }
}

</mosaic_0001>

<llo_original>
// kernel: tpu_custom_call.1
$region0: #{tpu_custom_call.1}
  #allocation0 [shape = 'u32[]', space=smem, size = 0x4, offset = 0x4, fixed_abs, tag = 'smem constant byte address 0x4 - core index']
  #allocation1 [shape = 'u32[72,128]{1,0:T(1,128)}', space=vmem, size = 0x9000, scoped, tag = 'internal scratch']
  %s0 = inlined_call_operand.hbm [shape: f32[16,32], index: 0, kind: input, shape index: {}]
  %s1 = inlined_call_operand.hbm [shape: f32[16,32], index: 1, kind: input, shape index: {}]
  %s2 = inlined_call_operand.vmem [shape: f32[16,1], index: 2, kind: output, shape index: {}]
  %s3 = sld [smem:[#allocation0]]
  $region26: #{tpu_custom_call.1} parent=0
    _
  %s5 = ssub.s32 1, %s3
  %s6 = scalar_select 0, %s5, %s3
  $region1: #{tpu_custom_call.1} parent=0
    #allocation2 [shape = 'u8[8192]{0}', space=vmem, size = 0x2000, scoped, tag = 'input window, operand 0, single buffered']
    #allocation3 [shape = 's32[1]{0}', space=sflag, size = 0x4, scoped, tag = 'scoped memory for tpu_custom_call.1']
    #allocation4 [shape = 'u8[8192]{0}', space=vmem, size = 0x2000, scoped, tag = 'input window, operand 1, single buffered']
    #allocation5 [shape = 's32[1]{0}', space=sflag, size = 0x4, scoped, tag = 'scoped memory for tpu_custom_call.1']
    %7 = vsyncpa [#allocation3], 0
    %8 = vsyncpa [#allocation5], 0
    // Predicated region
    $region2: #{tpu_custom_call.1} parent=1 // pred_check
      _
    $region3: #{tpu_custom_call.1} parent=1 // pred_check_branch
      %10 = sbr.rel (0) target = $region5
    $region4: #{tpu_custom_call.1} parent=1 // pred_region
      %12 = vsyncadd [#allocation3], 0
      %s13 = sshll.u32 %s0, 4
      %s14 = int_to_ptr.hbm [resolvable:$true] %s13
      %s15 = sshll.u32 [#allocation2], 4
      %s16 = int_to_ptr.vmem [resolvable:$true] %s15
      %21 = dma.hbm_to_vmem [thread:$0]  %s14, 256, %s16, [#allocation3], 128, 128, 8
    $region5: #{tpu_custom_call.1} parent=1 // pred_fallthru
      _
    // Predicated region
    $region6: #{tpu_custom_call.1} parent=1 // pred_check
      _
    $region7: #{tpu_custom_call.1} parent=1 // pred_check_branch
      %23 = sbr.rel (0) target = $region9
    $region8: #{tpu_custom_call.1} parent=1 // pred_region
      %25 = vsyncadd [#allocation5], 0
      %s26 = sshll.u32 %s1, 4
      %s27 = int_to_ptr.hbm [resolvable:$true] %s26
      %s28 = sshll.u32 [#allocation4], 4
      %s29 = int_to_ptr.vmem [resolvable:$true] %s28
      %34 = dma.hbm_to_vmem [thread:$0]  %s27, 256, %s29, [#allocation5], 128, 128, 8
    $region9: #{tpu_custom_call.1} parent=1 // pred_fallthru
      _
    // Predicated region
    $region10: #{tpu_custom_call.1} parent=1 // pred_check
      _
    $region11: #{tpu_custom_call.1} parent=1 // pred_check_branch
      %36 = sbr.rel (0) target = $region13
    $region12: #{tpu_custom_call.1} parent=1 // pred_region
      %38 = dma.done [#allocation3], 256
    $region13: #{tpu_custom_call.1} parent=1 // pred_fallthru
      _
    // Predicated region
    $region14: #{tpu_custom_call.1} parent=1 // pred_check
      _
    $region15: #{tpu_custom_call.1} parent=1 // pred_check_branch
      %40 = sbr.rel (0) target = $region17
    $region16: #{tpu_custom_call.1} parent=1 // pred_region
      %42 = dma.done [#allocation5], 256
    $region17: #{tpu_custom_call.1} parent=1 // pred_fallthru
      _
    %v43 = vld [vmem:[#allocation2] sm:$0xff]
    %v44 = vld [vmem:[#allocation2 + $0x8] sm:$0xff]
    %v45 = vld [vmem:[#allocation4] sm:$0xff]
    %v46 = vld [vmem:[#allocation4 + $0x8] sm:$0xff]
    %v47 = vmul.f32 %v43, %v45
    %v48 = vmul.f32 %v44, %v46
    %vm49 = vcmask 261120
    %v50 = vsel %vm49, %v47, 0.0
    %51 = vadd.xlane.f32.xlu0 %v50
    %v52 = vpop.xlane.xlu0 %51
    %v53 = vsel %vm49, %v48, 0.0
    %54 = vadd.xlane.f32.xlu0 %v53
    %v55 = vpop.xlane.xlu0 %54
    %v56 = vrcp.pop 2.0
    %v57 = vmul.f32 2.0, %v56
    %v58 = vsub.f32 1.0, %v57
    %v59 = vmul.f32 %v56, %v58
    %v60 = vadd.f32 %v56, %v59
    %vm61 = vweird.f32 %v56
    %v62 = vsel %vm61, %v56, %v60
    %v63 = vmul.f32 %v52, %v62
    %v64 = vmul.f32 %v55, %v62
    %vm65 = vcmask 7168
    %66 = vst.msk [vmem:[%s2] sm:$0xff] %vm65, %v63
    %67 = vst.msk [vmem:[%s2 + $0x8] sm:$0xff] %vm65, %v64
    // Predicated region
    $region18: #{tpu_custom_call.1} parent=1 // pred_check
      _
    $region19: #{tpu_custom_call.1} parent=1 // pred_check_branch
      %69 = sbr.rel (0) target = $region21
    $region20: #{tpu_custom_call.1} parent=1 // pred_region
      _
    $region21: #{tpu_custom_call.1} parent=1 // pred_fallthru
      _
    // Predicated region
    $region22: #{tpu_custom_call.1} parent=1 // pred_check
      _
    $region23: #{tpu_custom_call.1} parent=1 // pred_check_branch
      %71 = sbr.rel (0) target = $region25
    $region24: #{tpu_custom_call.1} parent=1 // pred_region
      _
    $region25: #{tpu_custom_call.1} parent=1 // pred_fallthru
      _
    %72 = vsyncpa [#allocation3], 1
    %73 = vsyncpa [#allocation5], 1

</llo_original>
